<compile_context>
chip_gen: v6e
topology: v6e:2x2x1
jax: 0.10.0
libtpu: 0.0.40
codegen_flags: <defaults>
</compile_context>

<pallas_src>
import math
import jax
import jax.numpy as jnp
from jax.experimental import pallas as pl
from jax.experimental.pallas import tpu as pltpu


def autoencoder_kernel(x_ref,
                       w1_ref, b1_ref,
                       w23_ref, b23_ref,
                       w4_ref, b4_ref,
                       out_ref):
    cdt = w1_ref.dtype
    # In-kernel cast (VPU filler) instead of a wrapper-side HBM cast pass.
    x = x_ref[...].astype(cdt)

    # encoder Linear(input_dim, 32) + ReLU   (f32 MXU accumulation, f32 VPU math)
    h1 = jnp.dot(x, w1_ref[...], preferred_element_type=jnp.float32) + b1_ref[...]
    h1 = jnp.maximum(h1, 0.0)

    # fused [encoder Linear(32, hidden)] @ [decoder Linear(hidden, 32)] + ReLU
    h2 = jnp.dot(h1.astype(cdt), w23_ref[...],
                 preferred_element_type=jnp.float32) + b23_ref[...]
    h2 = jnp.maximum(h2, 0.0)

    # decoder Linear(32, input_dim) + Sigmoid
    y = jnp.dot(h2.astype(cdt), w4_ref[...],
                preferred_element_type=jnp.float32) + b4_ref[...]
    # sigmoid(y) == 0.5 * tanh(0.5 * y) + 0.5 : a single EUP transcendental.
    out_ref[...] = (0.5 * jnp.tanh(0.5 * y) + 0.5).astype(out_ref.dtype)


def _round_up(n, m):
    return ((n + m - 1) // m) * m


def autoencoder_forward(x, params, *, compute_dtype=jnp.bfloat16,
                        out_dtype=None, tile_b=None):
    """x: (B, input_dim). params: dict of (in,out) weights and (1,out) biases.

    compute_dtype: dtype of the weight matrices / MXU operands (default bf16;
                   accumulation, biases and elementwise math stay float32).
    out_dtype:     output store dtype (default: x.dtype, preserving module
                   semantics; bf16 halves write-side HBM traffic).
    tile_b:        batch tile; default derived from a per-generation VMEM
                   byte budget.
    """
    B, D = x.shape
    compute_dtype = jnp.dtype(compute_dtype)
    out_dtype = jnp.dtype(out_dtype) if out_dtype is not None else jnp.dtype(x.dtype)

    f32 = jnp.float32
    w1 = params["w1"].astype(f32); b1 = params["b1"].astype(f32)
    w2 = params["w2"].astype(f32); b2 = params["b2"].astype(f32)
    w3 = params["w3"].astype(f32); b3 = params["b3"].astype(f32)
    w4 = params["w4"].astype(f32); b4 = params["b4"].astype(f32)

    # --- algebraic fusion of the two middle linears ---------------------------
    # Valid ONLY because the module has no nonlinearity between encoder
    # Linear(32, hidden) and decoder Linear(hidden, 32).
    assert w2.shape[0] == 32 and w3.shape[1] == 32 and w2.shape[1] == w3.shape[0]
    w23 = w2 @ w3                 # (32, 32)
    b23 = b2 @ w3 + b3            # (1, 32)

    # Weights in the MXU compute dtype (tiny arrays -> negligible wrapper cost).
    w1 = w1.astype(compute_dtype)
    w23 = w23.astype(compute_dtype)
    w4 = w4.astype(compute_dtype)

    x_item = jnp.dtype(x.dtype).itemsize
    o_item = out_dtype.itemsize
    c_item = compute_dtype.itemsize

    # Sublane packing of the batch tile: 8 rows for f32, 16 for bf16.
    sub = max(8, 32 // x_item, 32 // o_item)

    # --- per-generation VMEM budget -------------------------------------------
    # v5e/v6e: 128 MiB VMEM -> raise scoped limit to 96 MiB.
    # v7x:      64 MiB VMEM -> stay within the 32 MiB scoped default.
    try:
        vmem_cap = int(pltpu.get_tpu_info().vmem_capacity_bytes)
    except Exception:  # be conservative if the query is unavailable
        vmem_cap = 64 << 20
    vmem_limit = (96 << 20) if vmem_cap >= (128 << 20) else (32 << 20)

    # Grid-invariant parameter blocks are double-buffered by the pipeline;
    # subtract their footprint (and headroom for compiler scratch) from the
    # budget used to size the double-buffered x / out tiles.
    param_bytes = ((w1.size + w23.size + w4.size) * c_item
                   + (b1.size + b23.size + b4.size) * 4)
    headroom = 4 << 20
    row_bytes = 2 * D * x_item + 2 * D * o_item       # x + out, double-buffered
    buf_budget = vmem_limit - 2 * param_bytes - headroom

    if tile_b is None:
        tile_b = max(sub, (buf_budget // row_bytes) // sub * sub)
    else:
        tile_b = max(sub, _round_up(int(tile_b), sub))
    tile_b = min(tile_b, _round_up(B, sub))
    # Ensure >= 2 grid steps when the batch allows, so v7x's two TensorCores
    # both get work (harmless on single-TC v5e/v6e).
    if B >= 2 * sub:
        tile_b = min(tile_b, _round_up((B + 1) // 2, sub))
    if tile_b >= B:
        tile_b = B                                    # single full-extent block
    # Graceful fallback for very large D: ask for at least one minimal tile.
    vmem_limit = max(vmem_limit, sub * row_bytes + 2 * param_bytes + headroom)

    grid = (pl.cdiv(B, tile_b),)

    flops = 2 * B * (D * 32 + 32 * 32 + 32 * D)
    transcendentals = B * D                            # tanh in the epilogue
    bytes_accessed = B * D * (x_item + o_item) + param_bytes
    cost = pl.CostEstimate(flops=int(flops),
                           transcendentals=int(transcendentals),
                           bytes_accessed=int(bytes_accessed))

    inv = lambda i: (0, 0)     # grid-invariant parameter blocks stay resident

    out = pl.pallas_call(
        autoencoder_kernel,
        out_shape=jax.ShapeDtypeStruct((B, D), out_dtype),
        grid=grid,
        in_specs=[
            pl.BlockSpec((tile_b, D), lambda i: (i, 0)),   # x (ragged edge ok)
            pl.BlockSpec(w1.shape, inv), pl.BlockSpec(b1.shape, inv),
            pl.BlockSpec(w23.shape, inv), pl.BlockSpec(b23.shape, inv),
            pl.BlockSpec(w4.shape, inv), pl.BlockSpec(b4.shape, inv),
        ],
        out_specs=pl.BlockSpec((tile_b, D), lambda i: (i, 0)),
        compiler_params=pltpu.CompilerParams(
            dimension_semantics=("parallel",),
            vmem_limit_bytes=int(vmem_limit)),
        cost_estimate=cost,
    )(x, w1, b1, w23, b23, w4, b4)

    return out


def init_linear(key, fan_in, fan_out):
    """Deterministic init mirroring torch.nn.Linear (uniform +-1/sqrt(fan_in)).
    Returns W of shape (fan_in, fan_out) and b of shape (1, fan_out)."""
    kw, kb = jax.random.split(key)
    bound = 1.0 / math.sqrt(fan_in)
    w = jax.random.uniform(kw, (fan_in, fan_out), jnp.float32, -bound, bound)
    b = jax.random.uniform(kb, (1, fan_out), jnp.float32, -bound, bound)
    return w, b


def make_params(key, input_dim, hidden_dim):
    k1, k2, k3, k4 = jax.random.split(key, 4)
    w1, b1 = init_linear(k1, input_dim, 32)        # encoder Linear(input_dim, 32)
    w2, b2 = init_linear(k2, 32, hidden_dim)       # encoder Linear(32, hidden_dim)
    w3, b3 = init_linear(k3, hidden_dim, 32)       # decoder Linear(hidden_dim, 32)
    w4, b4 = init_linear(k4, 32, input_dim)        # decoder Linear(32, input_dim)
    return dict(w1=w1, b1=b1, w2=w2, b2=b2, w3=w3, b3=b3, w4=w4, b4=b4)


def reference_forward(x, p):
    h = jnp.maximum(x @ p["w1"] + p["b1"], 0.0)
    z = h @ p["w2"] + p["b2"]
    d = jnp.maximum(z @ p["w3"] + p["b3"], 0.0)
    y = d @ p["w4"] + p["b4"]
    return jax.nn.sigmoid(y)


if __name__ == "__main__":
    key = jax.random.PRNGKey(0)
    kx, kp = jax.random.split(key)

    batch = 8
    input_dim = 64
    hidden_dim = 16

    x = jax.random.uniform(kx, (batch, input_dim), jnp.float32)   # inputs in [0, 1)
    params = make_params(kp, input_dim, hidden_dim)
    ref = reference_forward(x, params)

    # Default path: bf16 weights / MXU operands, f32 in, f32 out.
    out = jax.block_until_ready(autoencoder_forward(x, params))
    assert out.shape == (batch, input_dim) and out.dtype == x.dtype
    assert jnp.allclose(out, ref, atol=2e-2, rtol=2e-2), "default path mismatch"

    # Full-f32 compute path: strict check (W23 fusion and the tanh-form sigmoid
    # only change rounding order).
    out_f32 = jax.block_until_ready(
        autoencoder_forward(x, params, compute_dtype=jnp.float32))
    assert jnp.allclose(out_f32, ref, atol=1e-5, rtol=1e-5), "f32 path mismatch"

    # Ragged multi-step grid: B=40 with tile_b=16 -> 3 grid steps, masked edge
    # block (no wrapper-side padding or slicing).
    x2 = jax.random.uniform(jax.random.PRNGKey(1), (40, input_dim), jnp.float32)
    ref2 = reference_forward(x2, params)
    out2 = jax.block_until_ready(autoencoder_forward(x2, params, tile_b=16))
    assert out2.shape == (40, input_dim)
    assert jnp.allclose(out2, ref2, atol=2e-2, rtol=2e-2), "ragged path mismatch"

    # bf16 output store (halves write-side HBM traffic on mem-bound shapes).
    out_bf16 = jax.block_until_ready(
        autoencoder_forward(x, params, out_dtype=jnp.bfloat16))
    assert out_bf16.dtype == jnp.bfloat16
    assert jnp.allclose(out_bf16.astype(jnp.float32), ref, atol=3e-2, rtol=3e-2), \
        "bf16-out path mismatch"

    print("KERNEL_OK")
</pallas_src>

<mosaic_0001>
module attributes {stable_mosaic.version = 11 : i64} {
  func.func @autoencoder_kernel(%arg0: i32, %arg1: memref<8x64xf32, #tpu.memory_space<vmem>>, %arg2: memref<64x32xbf16, #tpu.memory_space<vmem>>, %arg3: memref<1x32xf32, #tpu.memory_space<vmem>>, %arg4: memref<32x32xbf16, #tpu.memory_space<vmem>>, %arg5: memref<1x32xf32, #tpu.memory_space<vmem>>, %arg6: memref<32x64xbf16, #tpu.memory_space<vmem>>, %arg7: memref<1x64xf32, #tpu.memory_space<vmem>>, %arg8: memref<8x64xf32, #tpu.memory_space<vmem>>) attributes {dimension_semantics = [#tpu.dimension_semantics<parallel>], iteration_bounds = array<i64: 1>, scalar_prefetch = 0 : i64, scratch_operands = 0 : i64, tpu.core_type = #tpu.core_type<tc>, window_params = [{transform_indices = @transform_0, window_bounds = array<i64: 8, 64>}, {pipeline_mode = #tpu.pipeline_mode<synchronous>, transform_indices = @transform_1, window_bounds = array<i64: 64, 32>}, {pipeline_mode = #tpu.pipeline_mode<synchronous>, transform_indices = @transform_2, window_bounds = array<i64: 1, 32>}, {pipeline_mode = #tpu.pipeline_mode<synchronous>, transform_indices = @transform_3, window_bounds = array<i64: 32, 32>}, {pipeline_mode = #tpu.pipeline_mode<synchronous>, transform_indices = @transform_4, window_bounds = array<i64: 1, 32>}, {pipeline_mode = #tpu.pipeline_mode<synchronous>, transform_indices = @transform_5, window_bounds = array<i64: 32, 64>}, {pipeline_mode = #tpu.pipeline_mode<synchronous>, transform_indices = @transform_6, window_bounds = array<i64: 1, 64>}, {transform_indices = @transform_7, window_bounds = array<i64: 8, 64>}]} {
    %c0 = arith.constant 0 : index
    %c0_0 = arith.constant 0 : index
    %0 = vector.load %arg1[%c0, %c0_0] : memref<8x64xf32, #tpu.memory_space<vmem>>, vector<8x64xf32>
    %1 = arith.truncf %0 : vector<8x64xf32> to vector<8x64xbf16>
    %c0_1 = arith.constant 0 : index
    %c0_2 = arith.constant 0 : index
    %2 = vector.load %arg2[%c0_1, %c0_2] : memref<64x32xbf16, #tpu.memory_space<vmem>>, vector<64x32xbf16>
    %cst = arith.constant dense<0.000000e+00> : vector<8x32xf32>
    %3 = tpu.matmul %1, %2, %cst {dimension_numbers = #tpu.dot_dimension_numbers<[1], [0], [0], [1], [0, 0, 1, 1], [], []>} : vector<8x64xbf16>, vector<64x32xbf16>, vector<8x32xf32> -> vector<8x32xf32>
    %c0_3 = arith.constant 0 : index
    %c0_4 = arith.constant 0 : index
    %4 = vector.load %arg3[%c0_3, %c0_4] : memref<1x32xf32, #tpu.memory_space<vmem>>, vector<1x32xf32>
    %5 = vector.broadcast %4 : vector<1x32xf32> to vector<8x32xf32>
    %6 = arith.addf %3, %5 : vector<8x32xf32>
    %cst_5 = arith.constant 0.000000e+00 : f32
    %7 = vector.broadcast %cst_5 : f32 to vector<8x32xf32>
    %8 = arith.maximumf %6, %7 : vector<8x32xf32>
    %9 = arith.truncf %8 : vector<8x32xf32> to vector<8x32xbf16>
    %c0_6 = arith.constant 0 : index
    %c0_7 = arith.constant 0 : index
    %10 = vector.load %arg4[%c0_6, %c0_7] : memref<32x32xbf16, #tpu.memory_space<vmem>>, vector<32x32xbf16>
    %cst_8 = arith.constant dense<0.000000e+00> : vector<8x32xf32>
    %11 = tpu.matmul %9, %10, %cst_8 {dimension_numbers = #tpu.dot_dimension_numbers<[1], [0], [0], [1], [0, 0, 1, 1], [], []>} : vector<8x32xbf16>, vector<32x32xbf16>, vector<8x32xf32> -> vector<8x32xf32>
    %c0_9 = arith.constant 0 : index
    %c0_10 = arith.constant 0 : index
    %12 = vector.load %arg5[%c0_9, %c0_10] : memref<1x32xf32, #tpu.memory_space<vmem>>, vector<1x32xf32>
    %13 = vector.broadcast %12 : vector<1x32xf32> to vector<8x32xf32>
    %14 = arith.addf %11, %13 : vector<8x32xf32>
    %cst_11 = arith.constant 0.000000e+00 : f32
    %15 = vector.broadcast %cst_11 : f32 to vector<8x32xf32>
    %16 = arith.maximumf %14, %15 : vector<8x32xf32>
    %17 = arith.truncf %16 : vector<8x32xf32> to vector<8x32xbf16>
    %c0_12 = arith.constant 0 : index
    %c0_13 = arith.constant 0 : index
    %18 = vector.load %arg6[%c0_12, %c0_13] : memref<32x64xbf16, #tpu.memory_space<vmem>>, vector<32x64xbf16>
    %cst_14 = arith.constant dense<0.000000e+00> : vector<8x64xf32>
    %19 = tpu.matmul %17, %18, %cst_14 {dimension_numbers = #tpu.dot_dimension_numbers<[1], [0], [0], [1], [0, 0, 1, 1], [], []>} : vector<8x32xbf16>, vector<32x64xbf16>, vector<8x64xf32> -> vector<8x64xf32>
    %c0_15 = arith.constant 0 : index
    %c0_16 = arith.constant 0 : index
    %20 = vector.load %arg7[%c0_15, %c0_16] : memref<1x64xf32, #tpu.memory_space<vmem>>, vector<1x64xf32>
    %21 = vector.broadcast %20 : vector<1x64xf32> to vector<8x64xf32>
    %22 = arith.addf %19, %21 : vector<8x64xf32>
    %cst_17 = arith.constant 5.000000e-01 : f32
    %23 = vector.broadcast %cst_17 : f32 to vector<8x64xf32>
    %24 = arith.mulf %23, %22 : vector<8x64xf32>
    %25 = math.tanh %24 : vector<8x64xf32>
    %cst_18 = arith.constant 5.000000e-01 : f32
    %26 = vector.broadcast %cst_18 : f32 to vector<8x64xf32>
    %27 = arith.mulf %26, %25 : vector<8x64xf32>
    %cst_19 = arith.constant 5.000000e-01 : f32
    %28 = vector.broadcast %cst_19 : f32 to vector<8x64xf32>
    %29 = arith.addf %27, %28 : vector<8x64xf32>
    %c0_20 = arith.constant 0 : index
    %c0_21 = arith.constant 0 : index
    %30 = vector.load %arg8[%c0_20, %c0_21] : memref<8x64xf32, #tpu.memory_space<vmem>>, vector<8x64xf32>
    tpu.vector_store %arg8[%c0_20, %c0_21], %29 {strides = array<i32>} : memref<8x64xf32, #tpu.memory_space<vmem>>, vector<8x64xf32>,
    return
  }
  func.func @transform_0(%arg0: i32) -> (i32, i32) {
    %c0_i32 = arith.constant 0 : i32
    %c0_i32_0 = arith.constant 0 : i32
    return %arg0, %c0_i32 : i32, i32
  }
  func.func @transform_1(%arg0: i32) -> (i32, i32) {
    %c0_i32 = arith.constant 0 : i32
    %c0_i32_0 = arith.constant 0 : i32
    %c0_i32_1 = arith.constant 0 : i32
    return %c0_i32, %c0_i32_0 : i32, i32
  }
  func.func @transform_2(%arg0: i32) -> (i32, i32) {
    %c0_i32 = arith.constant 0 : i32
    %c0_i32_0 = arith.constant 0 : i32
    %c0_i32_1 = arith.constant 0 : i32
    return %c0_i32, %c0_i32_0 : i32, i32
  }
  func.func @transform_3(%arg0: i32) -> (i32, i32) {
    %c0_i32 = arith.constant 0 : i32
    %c0_i32_0 = arith.constant 0 : i32
    %c0_i32_1 = arith.constant 0 : i32
    return %c0_i32, %c0_i32_0 : i32, i32
  }
  func.func @transform_4(%arg0: i32) -> (i32, i32) {
    %c0_i32 = arith.constant 0 : i32
    %c0_i32_0 = arith.constant 0 : i32
    %c0_i32_1 = arith.constant 0 : i32
    return %c0_i32, %c0_i32_0 : i32, i32
  }
  func.func @transform_5(%arg0: i32) -> (i32, i32) {
    %c0_i32 = arith.constant 0 : i32
    %c0_i32_0 = arith.constant 0 : i32
    %c0_i32_1 = arith.constant 0 : i32
    return %c0_i32, %c0_i32_0 : i32, i32
  }
  func.func @transform_6(%arg0: i32) -> (i32, i32) {
    %c0_i32 = arith.constant 0 : i32
    %c0_i32_0 = arith.constant 0 : i32
    %c0_i32_1 = arith.constant 0 : i32
    return %c0_i32, %c0_i32_0 : i32, i32
  }
  func.func @transform_7(%arg0: i32) -> (i32, i32) {
    %c0_i32 = arith.constant 0 : i32
    %c0_i32_0 = arith.constant 0 : i32
    return %arg0, %c0_i32 : i32, i32
  }
}

</mosaic_0001>

<llo_original>
// kernel: tpu_custom_call.1
$region0: #{tpu_custom_call.1}
  #allocation0 [shape = 'u32[]', space=smem, size = 0x4, offset = 0x4, fixed_abs, tag = 'smem constant byte address 0x4 - core index']
  #allocation1 [shape = 'u32[144,128]{1,0:T(1,128)}', space=vmem, size = 0x12000, scoped, tag = 'internal scratch']
  %s0 = inlined_call_operand.vmem [shape: f32[8,64], index: 0, kind: input, shape index: {}]
  %s1 = inlined_call_operand.vmem [shape: bf16[64,32], index: 1, kind: input, shape index: {}]
  %s2 = inlined_call_operand.vmem [shape: f32[1,32], index: 2, kind: input, shape index: {}]
  %s3 = inlined_call_operand.vmem [shape: bf16[32,32], index: 3, kind: input, shape index: {}]
  %s4 = inlined_call_operand.vmem [shape: f32[1,32], index: 4, kind: input, shape index: {}]
  %s5 = inlined_call_operand.vmem [shape: bf16[32,64], index: 5, kind: input, shape index: {}]
  %s6 = inlined_call_operand.vmem [shape: f32[1,64], index: 6, kind: input, shape index: {}]
  %s7 = inlined_call_operand.hbm [shape: f32[8,64], index: 7, kind: output, shape index: {}]
  %s8 = sld [smem:[#allocation0]]
  $region38: #{tpu_custom_call.1} parent=0
    _
  %s10 = ssub.s32 1, %s8
  %s11 = scalar_select 0, %s10, %s8
  $region1: #{tpu_custom_call.1} parent=0
    #allocation2 [shape = 'u8[4096]{0}', space=vmem, size = 0x1000, scoped, tag = 'output window, operand 0, single buffered']
    #allocation3 [shape = 's32[1]{0}', space=sflag, size = 0x4, scoped, tag = 'scoped memory for tpu_custom_call.1']
    %12 = vsyncpa [#allocation3], 0
    // Predicated region
    $region2: #{tpu_custom_call.1} parent=1 // pred_check
      _
    $region3: #{tpu_custom_call.1} parent=1 // pred_check_branch
      %14 = sbr.rel (0) target = $region5
    $region4: #{tpu_custom_call.1} parent=1 // pred_region
      _
    $region5: #{tpu_custom_call.1} parent=1 // pred_fallthru
      _
    // Predicated region
    $region6: #{tpu_custom_call.1} parent=1 // pred_check
      _
    $region7: #{tpu_custom_call.1} parent=1 // pred_check_branch
      %16 = sbr.rel (0) target = $region9
    $region8: #{tpu_custom_call.1} parent=1 // pred_region
      _
    $region9: #{tpu_custom_call.1} parent=1 // pred_fallthru
      _
    // Predicated region
    $region10: #{tpu_custom_call.1} parent=1 // pred_check
      _
    $region11: #{tpu_custom_call.1} parent=1 // pred_check_branch
      %18 = sbr.rel (0) target = $region13
    $region12: #{tpu_custom_call.1} parent=1 // pred_region
      _
    $region13: #{tpu_custom_call.1} parent=1 // pred_fallthru
      _
    // Predicated region
    $region14: #{tpu_custom_call.1} parent=1 // pred_check
      _
    $region15: #{tpu_custom_call.1} parent=1 // pred_check_branch
      %20 = sbr.rel (0) target = $region17
    $region16: #{tpu_custom_call.1} parent=1 // pred_region
      _
    $region17: #{tpu_custom_call.1} parent=1 // pred_fallthru
      _
    // Predicated region
    $region18: #{tpu_custom_call.1} parent=1 // pred_check
      _
    $region19: #{tpu_custom_call.1} parent=1 // pred_check_branch
      %22 = sbr.rel (0) target = $region21
    $region20: #{tpu_custom_call.1} parent=1 // pred_region
      _
    $region21: #{tpu_custom_call.1} parent=1 // pred_fallthru
      _
    // Predicated region
    $region22: #{tpu_custom_call.1} parent=1 // pred_check
      _
    $region23: #{tpu_custom_call.1} parent=1 // pred_check_branch
      %24 = sbr.rel (0) target = $region25
    $region24: #{tpu_custom_call.1} parent=1 // pred_region
      _
    $region25: #{tpu_custom_call.1} parent=1 // pred_fallthru
      _
    // Predicated region
    $region26: #{tpu_custom_call.1} parent=1 // pred_check
      _
    $region27: #{tpu_custom_call.1} parent=1 // pred_check_branch
      %26 = sbr.rel (0) target = $region29
    $region28: #{tpu_custom_call.1} parent=1 // pred_region
      _
    $region29: #{tpu_custom_call.1} parent=1 // pred_fallthru
      _
    %v28 = vld [vmem:[%s0] sm:$0xff]
    %v29 = vpack.c.bf16 %v28, %v28
    %v30 = vld [vmem:[%s1] sm:$0xf]
    %v31 = vld [vmem:[%s1 + $0x4] sm:$0xf]
    %v32 = vld [vmem:[%s1 + $0x8] sm:$0xf]
    %v33 = vld [vmem:[%s1 + $0xc] sm:$0xf]
    %v34 = vld [vmem:[%s1 + $0x10] sm:$0xf]
    %v35 = vld [vmem:[%s1 + $0x14] sm:$0xf]
    %v36 = vld [vmem:[%s1 + $0x18] sm:$0xf]
    %v37 = vld [vmem:[%s1 + $0x1c] sm:$0xf]
    %v38 = vld [vmem:[%s2] sm:$0x1]
    %v40 = vlaneseq
    %v41 = vshrl.u32 %v40, 7
    %v42 = vsub.s32 0, %v41
    %v43 = vrot.slane %v38, %v42
    %v53 = vunpack.c.l.b16 %v30
    %v54 = vunpack.c.l.b16 %v31
    %v55 = vunpack.c.l.b16 %v32
    %v56 = vunpack.c.l.b16 %v33
    %v57 = vunpack.c.l.b16 %v34
    %v58 = vunpack.c.l.b16 %v35
    %v59 = vunpack.c.l.b16 %v36
    %v60 = vunpack.c.l.b16 %v37
    %v61 = vpack.c.b16 %v54, %v53
    %v62 = vpack.c.b16 %v56, %v55
    %v63 = vpack.c.b16 %v58, %v57
    %v64 = vpack.c.b16 %v60, %v59
    %vm69 = vcmask 523264
    %v71 = vsel %vm69, %v29, 0
    %73 = vmatprep.subr.bf16.mxu0 0
    %74 = vmatpush1.bf16.msra.mxu0 0
    %75 = vmatprep.subr.bf16.mxu0 0
    %76 = vmatpush1.bf16.msra.mxu0 0
    %77 = vmatprep.subr.bf16.mxu0 0
    %78 = vmatpush1.bf16.msra.mxu0 0
    %79 = vmatprep.subr.bf16.mxu0 0
    %80 = vmatpush1.bf16.msra.mxu0 0
    %81 = vmatprep.subr.bf16.mxu0 0
    %82 = vmatpush1.bf16.msra.mxu0 %v64
    %83 = vmatprep.subr.bf16.mxu0 0
    %84 = vmatpush1.bf16.msra.mxu0 %v63
    %85 = vmatprep.subr.bf16.mxu0 0
    %86 = vmatpush1.bf16.msra.mxu0 %v62
    %87 = vmatprep.subr.bf16.mxu0 0
    %88 = vmatpush1.bf16.msra.mxu0 %v61
    %89 = vmatprep.subr.bf16.mxu0 0
    %90 = vmatpush2.bf16.msra.mxu0 0
    %91 = vmatprep.subr.bf16.mxu0 0
    %92 = vmatpush2.bf16.msra.mxu0 0
    %93 = vmatprep.subr.bf16.mxu0 0
    %94 = vmatpush2.bf16.msra.mxu0 0
    %95 = vmatprep.subr.bf16.mxu0 0
    %96 = vmatpush2.bf16.msra.mxu0 0
    %97 = vmatprep.subr.bf16.mxu0 0
    %98 = vmatpush2.bf16.msra.mxu0 0
    %99 = vmatprep.subr.bf16.mxu0 0
    %100 = vmatpush2.bf16.msra.mxu0 0
    %101 = vmatprep.subr.bf16.mxu0 0
    %102 = vmatpush2.bf16.msra.mxu0 0
    %103 = vmatprep.subr.bf16.mxu0 0
    %104 = vmatpush2.bf16.msra.mxu0 0
    %105 = vmatprep.mubr.bf16.mxu0 0
    %106 = vmatmul.mubr.bf16.gmra.mxu0 %v71
    %v107 = vpop.f32.mrf.mxu0
    %v108 = vadd.f32 %v43, %v107
    %v109 = vpop.f32.mrf.mxu0
    %v110 = vpop.f32.mrf.mxu0
    %v111 = vpop.f32.mrf.mxu0
    %112 = vdwg.mxu0
    %v113 = vmax.f32 %v108, 0.0
    %v114 = vpack.c.bf16 %v113, %v113
    %v115 = vld [vmem:[%s3] sm:$0xf]
    %v116 = vld [vmem:[%s3 + $0x4] sm:$0xf]
    %v117 = vld [vmem:[%s3 + $0x8] sm:$0xf]
    %v118 = vld [vmem:[%s3 + $0xc] sm:$0xf]
    %v119 = vld [vmem:[%s4] sm:$0x1]
    %v121 = vlaneseq
    %v122 = vshrl.u32 %v121, 7
    %v123 = vsub.s32 0, %v122
    %v124 = vrot.slane %v119, %v123
    %v130 = vunpack.c.l.b16 %v115
    %v131 = vunpack.c.l.b16 %v116
    %v132 = vunpack.c.l.b16 %v117
    %v133 = vunpack.c.l.b16 %v118
    %v134 = vpack.c.b16 %v131, %v130
    %v135 = vpack.c.b16 %v133, %v132
    %vm138 = vcmask 261120
    %v140 = vsel %vm138, %v114, 0
    %142 = vmatprep.subr.bf16.mxu0 0
    %143 = vmatpush1.bf16.msra.mxu0 0
    %144 = vmatprep.subr.bf16.mxu0 0
    %145 = vmatpush1.bf16.msra.mxu0 0
    %146 = vmatprep.subr.bf16.mxu0 0
    %147 = vmatpush1.bf16.msra.mxu0 0
    %148 = vmatprep.subr.bf16.mxu0 0
    %149 = vmatpush1.bf16.msra.mxu0 0
    %150 = vmatprep.subr.bf16.mxu0 0
    %151 = vmatpush1.bf16.msra.mxu0 0
    %152 = vmatprep.subr.bf16.mxu0 0
    %153 = vmatpush1.bf16.msra.mxu0 0
    %154 = vmatprep.subr.bf16.mxu0 0
    %155 = vmatpush1.bf16.msra.mxu0 %v135
    %156 = vmatprep.subr.bf16.mxu0 0
    %157 = vmatpush1.bf16.msra.mxu0 %v134
    %158 = vmatprep.subr.bf16.mxu0 0
    %159 = vmatpush2.bf16.msra.mxu0 0
    %160 = vmatprep.subr.bf16.mxu0 0
    %161 = vmatpush2.bf16.msra.mxu0 0
    %162 = vmatprep.subr.bf16.mxu0 0
    %163 = vmatpush2.bf16.msra.mxu0 0
    %164 = vmatprep.subr.bf16.mxu0 0
    %165 = vmatpush2.bf16.msra.mxu0 0
    %166 = vmatprep.subr.bf16.mxu0 0
    %167 = vmatpush2.bf16.msra.mxu0 0
    %168 = vmatprep.subr.bf16.mxu0 0
    %169 = vmatpush2.bf16.msra.mxu0 0
    %170 = vmatprep.subr.bf16.mxu0 0
    %171 = vmatpush2.bf16.msra.mxu0 0
    %172 = vmatprep.subr.bf16.mxu0 0
    %173 = vmatpush2.bf16.msra.mxu0 0
    %174 = vmatprep.mubr.bf16.mxu0 0
    %175 = vmatmul.mubr.bf16.gmra.mxu0 %v140
    %v176 = vpop.f32.mrf.mxu0
    %v177 = vadd.f32 %v124, %v176
    %v178 = vpop.f32.mrf.mxu0
    %v179 = vpop.f32.mrf.mxu0
    %v180 = vpop.f32.mrf.mxu0
    %181 = vdwg.mxu0
    %v182 = vmax.f32 %v177, 0.0
    %v183 = vpack.c.bf16 %v182, %v182
    %v184 = vld [vmem:[%s5] sm:$0xf]
    %v185 = vld [vmem:[%s5 + $0x4] sm:$0xf]
    %v186 = vld [vmem:[%s5 + $0x8] sm:$0xf]
    %v187 = vld [vmem:[%s5 + $0xc] sm:$0xf]
    %v188 = vld [vmem:[%s6] sm:$0x1]
    %v190 = vlaneseq
    %v191 = vshrl.u32 %v190, 7
    %v192 = vsub.s32 0, %v191
    %v193 = vrot.slane %v188, %v192
    %v199 = vunpack.c.l.b16 %v184
    %v200 = vunpack.c.l.b16 %v185
    %v201 = vunpack.c.l.b16 %v186
    %v202 = vunpack.c.l.b16 %v187
    %v203 = vpack.c.b16 %v200, %v199
    %v204 = vpack.c.b16 %v202, %v201
    %v208 = vsel %vm138, %v183, 0
    %210 = vmatprep.subr.bf16.mxu0 0
    %211 = vmatpush1.bf16.msra.mxu0 0
    %212 = vmatprep.subr.bf16.mxu0 0
    %213 = vmatpush1.bf16.msra.mxu0 0
    %214 = vmatprep.subr.bf16.mxu0 0
    %215 = vmatpush1.bf16.msra.mxu0 0
    %216 = vmatprep.subr.bf16.mxu0 0
    %217 = vmatpush1.bf16.msra.mxu0 0
    %218 = vmatprep.subr.bf16.mxu0 0
    %219 = vmatpush1.bf16.msra.mxu0 0
    %220 = vmatprep.subr.bf16.mxu0 0
    %221 = vmatpush1.bf16.msra.mxu0 0
    %222 = vmatprep.subr.bf16.mxu0 0
    %223 = vmatpush1.bf16.msra.mxu0 %v204
    %224 = vmatprep.subr.bf16.mxu0 0
    %225 = vmatpush1.bf16.msra.mxu0 %v203
    %226 = vmatprep.subr.bf16.mxu0 0
    %227 = vmatpush2.bf16.msra.mxu0 0
    %228 = vmatprep.subr.bf16.mxu0 0
    %229 = vmatpush2.bf16.msra.mxu0 0
    %230 = vmatprep.subr.bf16.mxu0 0
    %231 = vmatpush2.bf16.msra.mxu0 0
    %232 = vmatprep.subr.bf16.mxu0 0
    %233 = vmatpush2.bf16.msra.mxu0 0
    %234 = vmatprep.subr.bf16.mxu0 0
    %235 = vmatpush2.bf16.msra.mxu0 0
    %236 = vmatprep.subr.bf16.mxu0 0
    %237 = vmatpush2.bf16.msra.mxu0 0
    %238 = vmatprep.subr.bf16.mxu0 0
    %239 = vmatpush2.bf16.msra.mxu0 0
    %240 = vmatprep.subr.bf16.mxu0 0
    %241 = vmatpush2.bf16.msra.mxu0 0
    %242 = vmatprep.mubr.bf16.mxu0 0
    %243 = vmatmul.mubr.bf16.gmra.mxu0 %v208
    %v244 = vpop.f32.mrf.mxu0
    %v245 = vadd.f32 %v193, %v244
    %v246 = vpop.f32.mrf.mxu0
    %v247 = vpop.f32.mrf.mxu0
    %v248 = vpop.f32.mrf.mxu0
    %249 = vdwg.mxu0
    %v250 = vmul.f32 %v245, 0.5
    %v251 = vtanh.pop %v250
    %v252 = vmul.f32 %v251, 0.5
    %v253 = vadd.f32 %v252, 0.5
    %254 = vst.msk [vmem:[#allocation2] sm:$0xff] %vm69, %v253
    // Predicated region
    $region30: #{tpu_custom_call.1} parent=1 // pred_check
      _
    $region31: #{tpu_custom_call.1} parent=1 // pred_check_branch
      %256 = sbr.rel (0) target = $region33
    $region32: #{tpu_custom_call.1} parent=1 // pred_region
      %s258 = ssub.s32 128, 128
      %259 = vsyncadd [#allocation3], %s258
      %s261 = sshll.u32 [#allocation2], 4
      %s262 = int_to_ptr.vmem [resolvable:$true] %s261
      %264 = dma.vmem_to_hbm [thread:$0]  %s262, 128, %s7, [#allocation3]
    $region33: #{tpu_custom_call.1} parent=1 // pred_fallthru
      _
    // Predicated region
    $region34: #{tpu_custom_call.1} parent=1 // pred_check
      _
    $region35: #{tpu_custom_call.1} parent=1 // pred_check_branch
      %266 = sbr.rel (0) target = $region37
    $region36: #{tpu_custom_call.1} parent=1 // pred_region
      %267 = dma.done [#allocation3], 128
    $region37: #{tpu_custom_call.1} parent=1 // pred_fallthru
      _
    %268 = vsyncpa [#allocation3], 1

</llo_original>
